<compile_context>
chip_gen: v7x
topology: tpu7x:2x2x1
jax: 0.10.0
libtpu: 0.0.40
codegen_flags: <defaults>
</compile_context>

<pallas_src>
import jax
import jax.numpy as jnp
import numpy as np
from jax import lax
from jax.experimental import pallas as pl
from jax.experimental.pallas import tpu as pltpu

# --- small, self-consistent problem sizes -------------------------------------------
N = 2            # batch
FEAT = 32        # classifeature
T = 8            # temporal length
V = 16           # num_point
C_OUT = 6        # c_output_size (must be a multiple of len(dilations)=3)
DE_IN = 1        # de_num_inputs (forced to 1 by the x.view in forward)
K = 3            # temporal kernel size of anticonv1
DIL = 4          # dilations[0] -- the only branch used in forward
PAD = (K + (K - 1) * (DIL - 1) - 1) // 2   # = 4
EPS = 1e-5       # BatchNorm2d default eps

TV = T * V        # per-sample (T, V) flattened onto lanes
L = N * TV        # all samples flattened onto lanes
SH = DIL * V      # lane shift realizing one temporal dilation step

# static assumptions baked into the flat-lane tap construction (reviewer concern)
assert DE_IN == 1, "x.view(N, 1, T, V) in the PyTorch forward forces de_num_inputs == 1"
assert C_OUT % 3 == 0, "# out channels must be a multiple of # branches (=3)"
assert K == 3 and PAD == DIL, "taps assumed at temporal offsets {+DIL, 0, -DIL}"
assert 0 < SH < TV, "dilation shift must stay inside one sample's T*V lanes"
assert TV % 128 == 0, "validated lane-dense configuration (T*V a multiple of 128)"

# per-channel parameter packing, one row per output channel (C_OUT, K+7 = 10):
#   cols 0..2 : anticonv1 temporal taps W_c[co, kt]
#   col  3    : anticonv1 bias
#   cols 4,5  : residual 1x1 weight, bias
#   cols 6,7  : BN(anticonv1) gamma, beta
#   cols 8,9  : BN(residual)  gamma, beta
P_COLS = K + 7


def _decoder_atcn_kernel(xf_ref, w1p_ref, b1p_ref, par_ref, out_ref):
    # ---- fcn1 (Linear), batch-flattened & temporally zero-padded via the weight layout --
    # xf: (1, N*FEAT) @ w1p: (N*FEAT, 2*SH + L)  ->  zp: (1, 2*SH + L)
    zp = jnp.dot(xf_ref[...], w1p_ref[...],
                 preferred_element_type=jnp.float32) + b1p_ref[...]

    # ---- temporal taps of ConvTranspose2d((K,1), pad=(PAD,0), dil=(DIL,1)), stride 1 ----
    # t_in = t_out + PAD - kt*DIL  ->  lane shifts {+SH, 0, -SH}; a within-sample lane
    # index masks out-of-range / cross-sample lanes to exact zero.
    li = lax.broadcasted_iota(jnp.int32, (1, L), 1) % TV
    z    = zp[:, SH:SH + L]                                          # kt=1: t_in = t_out
    tap0 = jnp.where(li < TV - SH, zp[:, 2 * SH:2 * SH + L], 0.0)    # kt=0: t_in = t_out+DIL
    tap2 = jnp.where(li >= SH, zp[:, 0:L], 0.0)                      # kt=2: t_in = t_out-DIL

    # ---- per-channel params as (C_OUT, 1) columns; lane-broadcast against (1, L) taps ---
    wc0, wc1, wc2 = par_ref[:, 0:1], par_ref[:, 1:2], par_ref[:, 2:3]
    bc = par_ref[:, 3:4]
    wr, br = par_ref[:, 4:5], par_ref[:, 5:6]
    gc, bec = par_ref[:, 6:7], par_ref[:, 7:8]
    gr, ber = par_ref[:, 8:9], par_ref[:, 9:10]

    # ---- anticonv1 branch, all channels at once: 3 f32 VPU FMAs over (C_OUT, L) ---------
    yc = wc0 * tap0 + wc1 * z + wc2 * tap2 + bc
    # ---- residual 1x1 branch -------------------------------------------------------------
    yr = wr * z + br

    # ---- BatchNorm2d (training mode, biased variance), fused sum/sumsq per channel ------
    inv_cnt = 1.0 / float(L)
    mc = jnp.sum(yc, axis=1, keepdims=True) * inv_cnt
    vc = jnp.sum(yc * yc, axis=1, keepdims=True) * inv_cnt - mc * mc   # E[x^2] - mu^2
    yc = gc * (yc - mc) * lax.rsqrt(vc + EPS) + bec
    mr = jnp.sum(yr, axis=1, keepdims=True) * inv_cnt
    vr = jnp.sum(yr * yr, axis=1, keepdims=True) * inv_cnt - mr * mr
    yr = gr * (yr - mr) * lax.rsqrt(vr + EPS) + ber

    # ---- out = branch + residual ; activation 'linear' == identity ----------------------
    out_ref[...] = yc + yr


@jax.jit
def decoder_atcn_forward(x, w1_t, b1, params):
    """x: (N, FEAT); w1_t: (FEAT, T*V) = fcn1.weight.T; b1: (T*V,); params: (C_OUT, 10)."""
    # Wrapper-side layout plumbing (pure reshapes/padding of weights & inputs; in a real
    # model the prepared weight is a constant):
    #   * batch-block-diagonal fcn1 weight -> the kernel's single dot directly produces the
    #     batch-flattened activation row (no in-kernel relayout), and
    #   * SH zero columns on each side realize the transposed conv's temporal zero padding.
    xf = x.reshape(1, N * FEAT)
    w_blk = jnp.kron(jnp.eye(N, dtype=w1_t.dtype), w1_t)          # (N*FEAT, N*TV)
    b_blk = jnp.tile(b1, N).reshape(1, N * TV)
    w1p = jnp.pad(w_blk, ((0, 0), (SH, SH)))                       # (N*FEAT, 2*SH + L)
    b1p = jnp.pad(b_blk, ((0, 0), (SH, SH)))                       # (1, 2*SH + L)

    out = pl.pallas_call(
        _decoder_atcn_kernel,
        out_shape=jax.ShapeDtypeStruct((C_OUT, L), jnp.float32),
        in_specs=[pl.BlockSpec(memory_space=pltpu.MemorySpace.VMEM)] * 4,
        out_specs=pl.BlockSpec(memory_space=pltpu.MemorySpace.VMEM),
    )(xf, w1p, b1p, params)

    # lane-dense (C_OUT, N*T*V) slab -> NCHW (N, C_OUT, T, V), matching the PyTorch output
    return out.reshape(C_OUT, N, T, V).transpose(1, 0, 2, 3)


def reference_forward(x, w1_t, b1, params):
    """Pure-JAX reference replicating the PyTorch forward (training-mode BN)."""
    z = jnp.dot(x, w1_t, precision=lax.Precision.HIGHEST) + b1   # (N, T*V)
    z = z.reshape(N, 1, T, V)                                    # NCHW, C=1
    zp = jnp.pad(z, ((0, 0), (0, 0), (PAD, PAD), (0, 0)))
    wc, bc = params[:, :K], params[:, K]
    wr, br = params[:, K + 1], params[:, K + 2]
    gc, bec = params[:, K + 3], params[:, K + 4]
    gr, ber = params[:, K + 5], params[:, K + 6]

    yc = jnp.zeros((N, C_OUT, T, V), jnp.float32)
    for kt in range(K):
        s = 2 * PAD - kt * DIL
        tap = zp[:, 0, s:s + T, :]                               # (N, T, V)
        yc = yc + wc[None, :, kt, None, None] * tap[:, None, :, :]
    yc = yc + bc[None, :, None, None]
    mu = yc.mean(axis=(0, 2, 3), keepdims=True)
    var = ((yc - mu) ** 2).mean(axis=(0, 2, 3), keepdims=True)
    yc = gc[None, :, None, None] * (yc - mu) / jnp.sqrt(var + EPS) + bec[None, :, None, None]

    yr = wr[None, :, None, None] * z + br[None, :, None, None]
    mu_r = yr.mean(axis=(0, 2, 3), keepdims=True)
    var_r = ((yr - mu_r) ** 2).mean(axis=(0, 2, 3), keepdims=True)
    yr = gr[None, :, None, None] * (yr - mu_r) / jnp.sqrt(var_r + EPS) + ber[None, :, None, None]

    return yc + yr


if __name__ == "__main__":
    key = jax.random.PRNGKey(0)
    ks = jax.random.split(key, 11)
    x = jax.random.normal(ks[0], (N, FEAT), jnp.float32)
    # fcn1 = nn.Linear(classifeature, num_point * de_num_inputs * T)
    w1_t = jax.random.normal(ks[1], (FEAT, TV), jnp.float32) * 0.1   # (in, out) = W^T
    b1 = jax.random.normal(ks[2], (TV,), jnp.float32) * 0.1
    # anticonv1: ConvTranspose2d(1, C_OUT, (K,1)) -> weight (1, C_OUT, K, 1), bias (C_OUT,)
    wc = jax.random.normal(ks[3], (C_OUT, K), jnp.float32) * 0.5
    bc = jax.random.normal(ks[4], (C_OUT,), jnp.float32) * 0.1
    # residual: ConvTranspose2d(1, C_OUT, (1,1)) -> weight (1, C_OUT, 1, 1), bias (C_OUT,)
    wr = jax.random.normal(ks[5], (C_OUT,), jnp.float32) * 0.5
    br = jax.random.normal(ks[6], (C_OUT,), jnp.float32) * 0.1
    # BatchNorm2d affine parameters
    gc = 1.0 + 0.1 * jax.random.normal(ks[7], (C_OUT,), jnp.float32)
    bec = 0.1 * jax.random.normal(ks[8], (C_OUT,), jnp.float32)
    gr = 1.0 + 0.1 * jax.random.normal(ks[9], (C_OUT,), jnp.float32)
    ber = 0.1 * jax.random.normal(ks[10], (C_OUT,), jnp.float32)

    params = jnp.concatenate(
        [wc, bc[:, None], wr[:, None], br[:, None],
         gc[:, None], bec[:, None], gr[:, None], ber[:, None]], axis=1)  # (C_OUT, 10)
    assert params.shape == (C_OUT, P_COLS)

    out = decoder_atcn_forward(x, w1_t, b1, params)
    out = jax.block_until_ready(out)
    assert out.shape == (N, C_OUT, T, V)

    ref = reference_forward(x, w1_t, b1, params)
    np.testing.assert_allclose(np.asarray(out), np.asarray(ref), rtol=2e-3, atol=2e-3)
    print("KERNEL_OK")
</pallas_src>

<mosaic_0001>
module attributes {stable_mosaic.version = 11 : i64} {
  func.func @_decoder_atcn_kernel(%arg0: memref<1x64xf32, #tpu.memory_space<vmem>>, %arg1: memref<64x384xf32, #tpu.memory_space<vmem>>, %arg2: memref<1x384xf32, #tpu.memory_space<vmem>>, %arg3: memref<6x10xf32, #tpu.memory_space<vmem>>, %arg4: memref<6x256xf32, #tpu.memory_space<vmem>>) attributes {dimension_semantics = [], scalar_prefetch = 0 : i64, scratch_operands = 0 : i64, tpu.core_type = #tpu.core_type<tc>} {
    %c0 = arith.constant 0 : index
    %c0_0 = arith.constant 0 : index
    %0 = vector.load %arg0[%c0, %c0_0] : memref<1x64xf32, #tpu.memory_space<vmem>>, vector<1x64xf32>
    %c0_1 = arith.constant 0 : index
    %c0_2 = arith.constant 0 : index
    %1 = vector.load %arg1[%c0_1, %c0_2] : memref<64x384xf32, #tpu.memory_space<vmem>>, vector<64x384xf32>
    %cst = arith.constant dense<0.000000e+00> : vector<1x384xf32>
    %2 = tpu.matmul %0, %1, %cst {dimension_numbers = #tpu.dot_dimension_numbers<[1], [0], [0], [1], [0, 0, 1, 1], [], []>} : vector<1x64xf32>, vector<64x384xf32>, vector<1x384xf32> -> vector<1x384xf32>
    %c0_3 = arith.constant 0 : index
    %c0_4 = arith.constant 0 : index
    %3 = vector.load %arg2[%c0_3, %c0_4] : memref<1x384xf32, #tpu.memory_space<vmem>>, vector<1x384xf32>
    %4 = arith.addf %2, %3 : vector<1x384xf32>
    %5 = tpu.iota {dimensions = array<i32: 1>} : vector<1x256xi32>
    %c128_i32 = arith.constant 128 : i32
    %c0_i32 = arith.constant 0 : i32
    %6 = arith.cmpi eq, %c128_i32, %c0_i32 : i32
    %c1_i32 = arith.constant 1 : i32
    %7 = arith.select %6, %c1_i32, %c128_i32 : i32
    %8 = vector.broadcast %7 : i32 to vector<1x256xi32>
    %9 = arith.remsi %5, %8 : vector<1x256xi32>
    %c0_i32_5 = arith.constant 0 : i32
    %10 = vector.broadcast %c0_i32_5 : i32 to vector<1x256xi32>
    %11 = arith.cmpi ne, %9, %10 : vector<1x256xi32>
    %c0_i32_6 = arith.constant 0 : i32
    %12 = vector.broadcast %c0_i32_6 : i32 to vector<1x256xi32>
    %13 = arith.cmpi slt, %9, %12 : vector<1x256xi32>
    %c0_i32_7 = arith.constant 0 : i32
    %14 = arith.cmpi slt, %7, %c0_i32_7 : i32
    %15 = vector.broadcast %14 : i1 to vector<1x256xi1>
    %16 = vector.broadcast %15 : vector<1x256xi1> to vector<1x256xi1>
    %17 = arith.xori %13, %16 : vector<1x256xi1>
    %18 = arith.andi %17, %11 : vector<1x256xi1>
    %19 = vector.broadcast %7 : i32 to vector<1x256xi32>
    %20 = arith.addi %9, %19 : vector<1x256xi32>
    %21 = arith.select %18, %20, %9 : vector<1x256xi1>, vector<1x256xi32>
    %22 = vector.extract_strided_slice %4 {offsets = [0, 64], sizes = [1, 256], strides = [1, 1]} : vector<1x384xf32> to vector<1x256xf32>
    %c64_i32 = arith.constant 64 : i32
    %23 = vector.broadcast %c64_i32 : i32 to vector<1x256xi32>
    %24 = arith.cmpi slt, %21, %23 : vector<1x256xi32>
    %25 = vector.extract_strided_slice %4 {offsets = [0, 128], sizes = [1, 256], strides = [1, 1]} : vector<1x384xf32> to vector<1x256xf32>
    %cst_8 = arith.constant 0.000000e+00 : f32
    %26 = vector.broadcast %cst_8 : f32 to vector<1x256xf32>
    %27 = arith.select %24, %25, %26 : vector<1x256xi1>, vector<1x256xf32>
    %c64_i32_9 = arith.constant 64 : i32
    %28 = vector.broadcast %c64_i32_9 : i32 to vector<1x256xi32>
    %29 = arith.cmpi sge, %21, %28 : vector<1x256xi32>
    %30 = vector.extract_strided_slice %4 {offsets = [0, 0], sizes = [1, 256], strides = [1, 1]} : vector<1x384xf32> to vector<1x256xf32>
    %cst_10 = arith.constant 0.000000e+00 : f32
    %31 = vector.broadcast %cst_10 : f32 to vector<1x256xf32>
    %32 = arith.select %29, %30, %31 : vector<1x256xi1>, vector<1x256xf32>
    %c0_11 = arith.constant 0 : index
    %c0_12 = arith.constant 0 : index
    %33 = vector.load %arg3[%c0_11, %c0_12] : memref<6x10xf32, #tpu.memory_space<vmem>>, vector<6x1xf32>
    %c0_13 = arith.constant 0 : index
    %c1 = arith.constant 1 : index
    %34 = vector.load %arg3[%c0_13, %c1] : memref<6x10xf32, #tpu.memory_space<vmem>>, vector<6x1xf32>
    %c0_14 = arith.constant 0 : index
    %c2 = arith.constant 2 : index
    %35 = vector.load %arg3[%c0_14, %c2] : memref<6x10xf32, #tpu.memory_space<vmem>>, vector<6x1xf32>
    %c0_15 = arith.constant 0 : index
    %c3 = arith.constant 3 : index
    %36 = vector.load %arg3[%c0_15, %c3] : memref<6x10xf32, #tpu.memory_space<vmem>>, vector<6x1xf32>
    %c0_16 = arith.constant 0 : index
    %c4 = arith.constant 4 : index
    %37 = vector.load %arg3[%c0_16, %c4] : memref<6x10xf32, #tpu.memory_space<vmem>>, vector<6x1xf32>
    %c0_17 = arith.constant 0 : index
    %c5 = arith.constant 5 : index
    %38 = vector.load %arg3[%c0_17, %c5] : memref<6x10xf32, #tpu.memory_space<vmem>>, vector<6x1xf32>
    %c0_18 = arith.constant 0 : index
    %c6 = arith.constant 6 : index
    %39 = vector.load %arg3[%c0_18, %c6] : memref<6x10xf32, #tpu.memory_space<vmem>>, vector<6x1xf32>
    %c0_19 = arith.constant 0 : index
    %c7 = arith.constant 7 : index
    %40 = vector.load %arg3[%c0_19, %c7] : memref<6x10xf32, #tpu.memory_space<vmem>>, vector<6x1xf32>
    %c0_20 = arith.constant 0 : index
    %c8 = arith.constant 8 : index
    %41 = vector.load %arg3[%c0_20, %c8] : memref<6x10xf32, #tpu.memory_space<vmem>>, vector<6x1xf32>
    %c0_21 = arith.constant 0 : index
    %c9 = arith.constant 9 : index
    %42 = vector.load %arg3[%c0_21, %c9] : memref<6x10xf32, #tpu.memory_space<vmem>>, vector<6x1xf32>
    %43 = vector.broadcast %33 : vector<6x1xf32> to vector<6x256xf32>
    %44 = vector.broadcast %27 : vector<1x256xf32> to vector<6x256xf32>
    %45 = arith.mulf %43, %44 : vector<6x256xf32>
    %46 = vector.broadcast %34 : vector<6x1xf32> to vector<6x256xf32>
    %47 = vector.broadcast %22 : vector<1x256xf32> to vector<6x256xf32>
    %48 = arith.mulf %46, %47 : vector<6x256xf32>
    %49 = arith.addf %45, %48 : vector<6x256xf32>
    %50 = vector.broadcast %35 : vector<6x1xf32> to vector<6x256xf32>
    %51 = vector.broadcast %32 : vector<1x256xf32> to vector<6x256xf32>
    %52 = arith.mulf %50, %51 : vector<6x256xf32>
    %53 = arith.addf %49, %52 : vector<6x256xf32>
    %54 = vector.broadcast %36 : vector<6x1xf32> to vector<6x256xf32>
    %55 = arith.addf %53, %54 : vector<6x256xf32>
    %56 = vector.broadcast %37 : vector<6x1xf32> to vector<6x256xf32>
    %57 = vector.broadcast %22 : vector<1x256xf32> to vector<6x256xf32>
    %58 = arith.mulf %56, %57 : vector<6x256xf32>
    %59 = vector.broadcast %38 : vector<6x1xf32> to vector<6x256xf32>
    %60 = arith.addf %58, %59 : vector<6x256xf32>
    %cst_22 = arith.constant dense<0.000000e+00> : vector<6xf32>
    %61 = vector.multi_reduction <add>, %55, %cst_22 [1] : vector<6x256xf32> to vector<6xf32>
    %62 = vector.shape_cast %61 : vector<6xf32> to vector<6x1xf32>
    %cst_23 = arith.constant 3.906250e-03 : f32
    %63 = vector.broadcast %cst_23 : f32 to vector<6x1xf32>
    %64 = arith.mulf %62, %63 : vector<6x1xf32>
    %65 = arith.mulf %55, %55 : vector<6x256xf32>
    %cst_24 = arith.constant dense<0.000000e+00> : vector<6xf32>
    %66 = vector.multi_reduction <add>, %65, %cst_24 [1] : vector<6x256xf32> to vector<6xf32>
    %67 = vector.shape_cast %66 : vector<6xf32> to vector<6x1xf32>
    %cst_25 = arith.constant 3.906250e-03 : f32
    %68 = vector.broadcast %cst_25 : f32 to vector<6x1xf32>
    %69 = arith.mulf %67, %68 : vector<6x1xf32>
    %70 = arith.mulf %64, %64 : vector<6x1xf32>
    %71 = arith.subf %69, %70 : vector<6x1xf32>
    %72 = vector.broadcast %64 : vector<6x1xf32> to vector<6x256xf32>
    %73 = arith.subf %55, %72 : vector<6x256xf32>
    %74 = vector.broadcast %39 : vector<6x1xf32> to vector<6x256xf32>
    %75 = arith.mulf %74, %73 : vector<6x256xf32>
    %cst_26 = arith.constant 9.99999974E-6 : f32
    %76 = vector.broadcast %cst_26 : f32 to vector<6x1xf32>
    %77 = arith.addf %71, %76 : vector<6x1xf32>
    %78 = math.rsqrt %77 : vector<6x1xf32>
    %79 = vector.broadcast %78 : vector<6x1xf32> to vector<6x256xf32>
    %80 = arith.mulf %75, %79 : vector<6x256xf32>
    %81 = vector.broadcast %40 : vector<6x1xf32> to vector<6x256xf32>
    %82 = arith.addf %80, %81 : vector<6x256xf32>
    %cst_27 = arith.constant dense<0.000000e+00> : vector<6xf32>
    %83 = vector.multi_reduction <add>, %60, %cst_27 [1] : vector<6x256xf32> to vector<6xf32>
    %84 = vector.shape_cast %83 : vector<6xf32> to vector<6x1xf32>
    %cst_28 = arith.constant 3.906250e-03 : f32
    %85 = vector.broadcast %cst_28 : f32 to vector<6x1xf32>
    %86 = arith.mulf %84, %85 : vector<6x1xf32>
    %87 = arith.mulf %60, %60 : vector<6x256xf32>
    %cst_29 = arith.constant dense<0.000000e+00> : vector<6xf32>
    %88 = vector.multi_reduction <add>, %87, %cst_29 [1] : vector<6x256xf32> to vector<6xf32>
    %89 = vector.shape_cast %88 : vector<6xf32> to vector<6x1xf32>
    %cst_30 = arith.constant 3.906250e-03 : f32
    %90 = vector.broadcast %cst_30 : f32 to vector<6x1xf32>
    %91 = arith.mulf %89, %90 : vector<6x1xf32>
    %92 = arith.mulf %86, %86 : vector<6x1xf32>
    %93 = arith.subf %91, %92 : vector<6x1xf32>
    %94 = vector.broadcast %86 : vector<6x1xf32> to vector<6x256xf32>
    %95 = arith.subf %60, %94 : vector<6x256xf32>
    %96 = vector.broadcast %41 : vector<6x1xf32> to vector<6x256xf32>
    %97 = arith.mulf %96, %95 : vector<6x256xf32>
    %cst_31 = arith.constant 9.99999974E-6 : f32
    %98 = vector.broadcast %cst_31 : f32 to vector<6x1xf32>
    %99 = arith.addf %93, %98 : vector<6x1xf32>
    %100 = math.rsqrt %99 : vector<6x1xf32>
    %101 = vector.broadcast %100 : vector<6x1xf32> to vector<6x256xf32>
    %102 = arith.mulf %97, %101 : vector<6x256xf32>
    %103 = vector.broadcast %42 : vector<6x1xf32> to vector<6x256xf32>
    %104 = arith.addf %102, %103 : vector<6x256xf32>
    %105 = arith.addf %82, %104 : vector<6x256xf32>
    %c0_32 = arith.constant 0 : index
    %c0_33 = arith.constant 0 : index
    %106 = vector.load %arg4[%c0_32, %c0_33] : memref<6x256xf32, #tpu.memory_space<vmem>>, vector<6x256xf32>
    tpu.vector_store %arg4[%c0_32, %c0_33], %105 {strides = array<i32>} : memref<6x256xf32, #tpu.memory_space<vmem>>, vector<6x256xf32>,
    return
  }
}

</mosaic_0001>

<llo_original>
// kernel: tile.8
$region0: #{tile.8}
  #allocation0 [shape = 's32[1]{0}', space=sflag, size = 0x4, scoped, tag = 'scoped memory for tile.8']
  %s0 = inlined_call_operand.vmem [shape: f32[128], index: 0, kind: input, shape index: {}]
  %s1 = inlined_call_operand.vmem [shape: f32[2,128], index: 1, kind: output, shape index: {}]
  // Predicated region
  $region2: #{tile.8} parent=0 // pred_check
    _
  $region3: #{tile.8} parent=0 // pred_check_branch
    %3 = sbr.rel (0) target = $region5
  $region4: #{tile.8} parent=0 // pred_region
    _
  $region5: #{tile.8} parent=0 // pred_fallthru
    _
  %v4 = vld [vmem:[%s0] ss:$0 sm:$0xff]
  %5 = vst [vmem:[%s1] sm:$0x3] %v4

// kernel: decoder_atcn_forward.1
$region0: #{decoder_atcn_forward.1}
  #allocation0 [shape = 'u32[]', space=smem, size = 0x4, offset = 0x4, fixed_abs, tag = 'smem constant byte address 0x4 - core index']
  #allocation1 [shape = 'u32[144,128]{1,0:T(1,128)}', space=vmem, size = 0x12000, scoped, tag = 'internal scratch']
  %s0 = inlined_call_operand.vmem [shape: f32[1,64], index: 0, kind: input, shape index: {}]
  %s1 = inlined_call_operand.vmem [shape: f32[64,384], index: 1, kind: input, shape index: {}]
  %s2 = inlined_call_operand.vmem [shape: f32[1,384], index: 2, kind: input, shape index: {}]
  %s3 = inlined_call_operand.vmem [shape: f32[6,10], index: 3, kind: input, shape index: {}]
  %s4 = inlined_call_operand.vmem [shape: f32[6,256], index: 4, kind: output, shape index: {}]
  %s5 = sld [smem:[#allocation0]]
  $region26: #{decoder_atcn_forward.1} parent=0
    _
  %s7 = ssub.s32 1, %s5
  %s8 = scalar_select 0, %s7, %s5
  // Predicated region
  $region2: #{decoder_atcn_forward.1} parent=0 // pred_check
    _
  $region3: #{decoder_atcn_forward.1} parent=0 // pred_check_branch
    %10 = sbr.rel (0) target = $region5
  $region4: #{decoder_atcn_forward.1} parent=0 // pred_region
    _
  $region5: #{decoder_atcn_forward.1} parent=0 // pred_fallthru
    _
  // Predicated region
  $region6: #{decoder_atcn_forward.1} parent=0 // pred_check
    _
  $region7: #{decoder_atcn_forward.1} parent=0 // pred_check_branch
    %12 = sbr.rel (0) target = $region9
  $region8: #{decoder_atcn_forward.1} parent=0 // pred_region
    _
  $region9: #{decoder_atcn_forward.1} parent=0 // pred_fallthru
    _
  // Predicated region
  $region10: #{decoder_atcn_forward.1} parent=0 // pred_check
    _
  $region11: #{decoder_atcn_forward.1} parent=0 // pred_check_branch
    %14 = sbr.rel (0) target = $region13
  $region12: #{decoder_atcn_forward.1} parent=0 // pred_region
    _
  $region13: #{decoder_atcn_forward.1} parent=0 // pred_fallthru
    _
  // Predicated region
  $region14: #{decoder_atcn_forward.1} parent=0 // pred_check
    _
  $region15: #{decoder_atcn_forward.1} parent=0 // pred_check_branch
    %16 = sbr.rel (0) target = $region17
  $region16: #{decoder_atcn_forward.1} parent=0 // pred_region
    _
  $region17: #{decoder_atcn_forward.1} parent=0 // pred_fallthru
    _
  %v17 = vld [vmem:[%s0] sm:$0x1]
  %v18 = vld [vmem:[%s1] sm:$0xff]
  %v19 = vld [vmem:[%s1 + $0x8] sm:$0xff]
  %v20 = vld [vmem:[%s1 + $0x10] sm:$0xff]
  %v21 = vld [vmem:[%s1 + $0x18] sm:$0xff]
  %v22 = vld [vmem:[%s1 + $0x20] sm:$0xff]
  %v23 = vld [vmem:[%s1 + $0x28] sm:$0xff]
  %v24 = vld [vmem:[%s1 + $0x30] sm:$0xff]
  %v25 = vld [vmem:[%s1 + $0x38] sm:$0xff]
  %v26 = vld [vmem:[%s1 + $0x40] sm:$0xff]
  %v27 = vld [vmem:[%s1 + $0x48] sm:$0xff]
  %v28 = vld [vmem:[%s1 + $0x50] sm:$0xff]
  %v29 = vld [vmem:[%s1 + $0x58] sm:$0xff]
  %v30 = vld [vmem:[%s1 + $0x60] sm:$0xff]
  %v31 = vld [vmem:[%s1 + $0x68] sm:$0xff]
  %v32 = vld [vmem:[%s1 + $0x70] sm:$0xff]
  %v33 = vld [vmem:[%s1 + $0x78] sm:$0xff]
  %v34 = vld [vmem:[%s1 + $0x80] sm:$0xff]
  %v35 = vld [vmem:[%s1 + $0x88] sm:$0xff]
  %v36 = vld [vmem:[%s1 + $0x90] sm:$0xff]
  %v37 = vld [vmem:[%s1 + $0x98] sm:$0xff]
  %v38 = vld [vmem:[%s1 + $0xa0] sm:$0xff]
  %v39 = vld [vmem:[%s1 + $0xa8] sm:$0xff]
  %v40 = vld [vmem:[%s1 + $0xb0] sm:$0xff]
  %v41 = vld [vmem:[%s1 + $0xb8] sm:$0xff]
  %v42 = vld [vmem:[%s2] sm:$0x7]
  %v44 = vlaneseq
  %v45 = vshrl.u32 %v44, 7
  %v46 = vsub.s32 0, %v45
  %v47 = vrot.slane %v42, %v46
  %v48 = vlaneseq
  %v49 = vshrl.u32 %v48, 7
  %v50 = vsub.s32 1, %v49
  %v51 = vrot.slane %v42, %v50
  %v52 = vlaneseq
  %v53 = vshrl.u32 %v52, 7
  %v54 = vsub.s32 2, %v53
  %v55 = vrot.slane %v42, %v54
  %vm59 = vcmask 523264
  %v61 = vsel %vm59, %v17, 0
  %63 = vmatprep.subr.mxu0 %v19
  %64 = vmatpush1.msra.mxu0 %v18
  %65 = vmatprep.subr.mxu0 %v22
  %66 = vmatpush1.msra.mxu0 %v21
  %67 = vmatprep.subr.mxu0 %v25
  %68 = vmatpush1.msra.mxu0 %v24
  %69 = vmatprep.subr.mxu0 %v28
  %70 = vmatpush1.msra.mxu0 %v27
  %71 = vmatprep.subr.mxu0 %v31
  %72 = vmatpush1.msra.mxu0 %v30
  %73 = vmatprep.subr.mxu0 %v34
  %74 = vmatpush1.msra.mxu0 %v33
  %75 = vmatprep.subr.mxu0 %v37
  %76 = vmatpush1.msra.mxu0 %v36
  %77 = vmatprep.subr.mxu0 %v40
  %78 = vmatpush1.msra.mxu0 %v39
  %79 = vmatprep.subr.mxu0 0.0
  %80 = vmatpush1.msra.mxu0 0.0
  %81 = vmatprep.subr.mxu0 0.0
  %82 = vmatpush1.msra.mxu0 0.0
  %83 = vmatprep.subr.mxu0 0.0
  %84 = vmatpush1.msra.mxu0 0.0
  %85 = vmatprep.subr.mxu0 0.0
  %86 = vmatpush1.msra.mxu0 0.0
  %87 = vmatprep.subr.mxu0 0.0
  %88 = vmatpush1.msra.mxu0 0.0
  %89 = vmatprep.subr.mxu0 0.0
  %90 = vmatpush1.msra.mxu0 0.0
  %91 = vmatprep.subr.mxu0 0.0
  %92 = vmatpush1.msra.mxu0 0.0
  %93 = vmatprep.subr.mxu0 0.0
  %94 = vmatpush1.msra.mxu0 0.0
  %95 = vmatprep.subr.mxu0 0.0
  %96 = vmatpush1.msra.mxu0 0.0
  %97 = vmatprep.subr.mxu0 0.0
  %98 = vmatpush1.msra.mxu0 0.0
  %99 = vmatprep.subr.mxu0 0.0
  %100 = vmatpush1.msra.mxu0 0.0
  %101 = vmatprep.subr.mxu0 0.0
  %102 = vmatpush1.msra.mxu0 0.0
  %103 = vmatprep.subr.mxu0 0.0
  %104 = vmatpush1.msra.mxu0 0.0
  %105 = vmatprep.subr.mxu0 0.0
  %106 = vmatpush1.msra.mxu0 0.0
  %107 = vmatprep.subr.mxu0 0.0
  %108 = vmatpush1.msra.mxu0 0.0
  %109 = vmatprep.subr.mxu0 0.0
  %110 = vmatpush1.msra.mxu0 0.0
  %111 = vmatprep.subr.mxu0 0.0
  %112 = vmatpush1.msra.mxu0 0.0
  %113 = vmatprep.subr.mxu0 0.0
  %114 = vmatpush1.msra.mxu0 0.0
  %115 = vmatprep.subr.mxu0 0.0
  %116 = vmatpush1.msra.mxu0 0.0
  %117 = vmatprep.subr.mxu0 0.0
  %118 = vmatpush1.msra.mxu0 0.0
  %119 = vmatprep.subr.mxu0 0.0
  %120 = vmatpush1.msra.mxu0 0.0
  %121 = vmatprep.subr.mxu0 0.0
  %122 = vmatpush1.msra.mxu0 0.0
  %123 = vmatprep.subr.mxu0 0.0
  %124 = vmatpush1.msra.mxu0 0.0
  %125 = vmatprep.subr.mxu0 0.0
  %126 = vmatpush1.msra.mxu0 0.0
  %127 = vmatprep.mubr.f32.mxu0 0.0
  %128 = vmatmul.mubr.f32.gmra.mrb[0].mxu0 %v61
  %v129 = vpop.f32.mrb[0].mxu0
  %v130 = vadd.f32 %v47, %v129
  %v131 = vpop.f32.mrb[0].mxu0
  %v132 = vadd.f32 %v51, %v131
  %133 = vdwg.mxu0
  %134 = vmatprep.subr.mxu0 0.0
  %135 = vmatpush1.msra.mxu0 %v20
  %136 = vmatprep.subr.mxu0 0.0
  %137 = vmatpush1.msra.mxu0 %v23
  %138 = vmatprep.subr.mxu0 0.0
  %139 = vmatpush1.msra.mxu0 %v26
  %140 = vmatprep.subr.mxu0 0.0
  %141 = vmatpush1.msra.mxu0 %v29
  %142 = vmatprep.subr.mxu0 0.0
  %143 = vmatpush1.msra.mxu0 %v32
  %144 = vmatprep.subr.mxu0 0.0
  %145 = vmatpush1.msra.mxu0 %v35
  %146 = vmatprep.subr.mxu0 0.0
  %147 = vmatpush1.msra.mxu0 %v38
  %148 = vmatprep.subr.mxu0 0.0
  %149 = vmatpush1.msra.mxu0 %v41
  %150 = vmatprep.subr.mxu0 0.0
  %151 = vmatpush1.msra.mxu0 0.0
  %152 = vmatprep.subr.mxu0 0.0
  %153 = vmatpush1.msra.mxu0 0.0
  %154 = vmatprep.subr.mxu0 0.0
  %155 = vmatpush1.msra.mxu0 0.0
  %156 = vmatprep.subr.mxu0 0.0
  %157 = vmatpush1.msra.mxu0 0.0
  %158 = vmatprep.subr.mxu0 0.0
  %159 = vmatpush1.msra.mxu0 0.0
  %160 = vmatprep.subr.mxu0 0.0
  %161 = vmatpush1.msra.mxu0 0.0
  %162 = vmatprep.subr.mxu0 0.0
  %163 = vmatpush1.msra.mxu0 0.0
  %164 = vmatprep.subr.mxu0 0.0
  %165 = vmatpush1.msra.mxu0 0.0
  %166 = vmatprep.subr.mxu0 0.0
  %167 = vmatpush1.msra.mxu0 0.0
  %168 = vmatprep.subr.mxu0 0.0
  %169 = vmatpush1.msra.mxu0 0.0
  %170 = vmatprep.subr.mxu0 0.0
  %171 = vmatpush1.msra.mxu0 0.0
  %172 = vmatprep.subr.mxu0 0.0
  %173 = vmatpush1.msra.mxu0 0.0
  %174 = vmatprep.subr.mxu0 0.0
  %175 = vmatpush1.msra.mxu0 0.0
  %176 = vmatprep.subr.mxu0 0.0
  %177 = vmatpush1.msra.mxu0 0.0
  %178 = vmatprep.subr.mxu0 0.0
  %179 = vmatpush1.msra.mxu0 0.0
  %180 = vmatprep.subr.mxu0 0.0
  %181 = vmatpush1.msra.mxu0 0.0
  %182 = vmatprep.subr.mxu0 0.0
  %183 = vmatpush1.msra.mxu0 0.0
  %184 = vmatprep.subr.mxu0 0.0
  %185 = vmatpush1.msra.mxu0 0.0
  %186 = vmatprep.subr.mxu0 0.0
  %187 = vmatpush1.msra.mxu0 0.0
  %188 = vmatprep.subr.mxu0 0.0
  %189 = vmatpush1.msra.mxu0 0.0
  %190 = vmatprep.subr.mxu0 0.0
  %191 = vmatpush1.msra.mxu0 0.0
  %192 = vmatprep.subr.mxu0 0.0
  %193 = vmatpush1.msra.mxu0 0.0
  %194 = vmatprep.subr.mxu0 0.0
  %195 = vmatpush1.msra.mxu0 0.0
  %196 = vmatprep.subr.mxu0 0.0
  %197 = vmatpush1.msra.mxu0 0.0
  %198 = vmatprep.mubr.f32.mxu0 0.0
  %199 = vmatmul.mubr.f32.gmra.mrb[0].mxu0 %v61
  %v200 = vpop.f32.mrb[0].mxu0
  %v201 = vadd.f32 %v55, %v200
  %v202 = vpop.f32.mrb[0].mxu0
  %203 = vdwg.mxu0
  %v204 = vlaneseq
  %v205 = vand.u32 %v204, 127
  %v206 = vadd.s32 %v205, 128
  %vm207 = vcmp.lt.s32.totalorder %v205, 0
  %v208 = vsub.s32 0, %v205
  %v209 = vsel %vm207, %v208, %v205
  %v210 = vshrl.u32 %v209, 7
  %v211 = vand.u32 %v209, 127
  %v212 = vsub.s32 0, %v211
  %v213 = vsel %vm207, %v212, %v211
  %vm214 = vcmp.lt.s32.totalorder %v206, 0
  %v215 = vsub.s32 0, %v206
  %v216 = vsel %vm214, %v215, %v206
  %v217 = vshrl.u32 %v216, 7
  %v218 = vand.u32 %v216, 127
  %v219 = vsub.s32 0, %v218
  %v220 = vsel %vm214, %v219, %v218
  %vm221 = vcmp.ne.s32.totalorder %v213, 0
  %vm222 = vcmp.ne.s32.totalorder %v220, 0
  %vm223 = vcmp.lt.s32.totalorder %v213, 0
  %vm224 = vcmp.lt.s32.totalorder %v220, 0
  %vm225 = vmand %vm223, %vm221
  %vm226 = vmand %vm224, %vm222
  %v227 = vadd.s32 %v213, 128
  %v228 = vadd.s32 %v220, 128
  %v229 = vsel %vm225, %v227, %v213
  %v230 = vsel %vm226, %v228, %v220
  %vm231 = vcmp.lt.s32.totalorder %v229, 64
  %vm232 = vcmp.lt.s32.totalorder %v230, 64
  %v233 = vsel %vm231, %v132, 0.0
  %v234 = vsel %vm232, %v201, 0.0
  %vm235 = vcmp.ge.s32.totalorder %v229, 64
  %vm236 = vcmp.ge.s32.totalorder %v230, 64
  %v237 = vsel %vm235, %v130, 0.0
  %v238 = vsel %vm236, %v132, 0.0
  %v239 = vld [vmem:[%s3] sm:$0x3f]
  %241 = vset.pattern.permute.xlu0 0
  %242 = vperm.xlu0 %241, %v239
  %v243 = vpop.permute.xlu0 %242
  %v245 = vlaneseq
  %v246 = vshrl.u32 %v245, 7
  %v247 = vsub.s32 0, %v246
  %v248 = vrot.slane %v233, %v247
  %v249 = vlaneseq
  %v250 = vshrl.u32 %v249, 7
  %v251 = vsub.s32 0, %v250
  %v252 = vrot.slane %v234, %v251
  %v253 = vmul.f32 %v243, %v248
  %v254 = vmul.f32 %v243, %v252
  %255 = vset.pattern.permute.xlu0 1
  %256 = vperm.xlu0 %255, %v239
  %v257 = vpop.permute.xlu0 %256
  %v259 = vlaneseq
  %v260 = vshrl.u32 %v259, 7
  %v261 = vsub.s32 0, %v260
  %v262 = vrot.slane %v130, %v261
  %v263 = vlaneseq
  %v264 = vshrl.u32 %v263, 7
  %v265 = vsub.s32 0, %v264
  %v266 = vrot.slane %v132, %v265
  %v267 = vlaneseq
  %v268 = vshrl.u32 %v267, 7
  %v269 = vsub.s32 0, %v268
  %v270 = vrot.slane %v201, %v269
  %v271 = vmul.f32 %v257, %v262
  %v272 = vmul.f32 %v257, %v266
  %v273 = vmul.f32 %v257, %v270
  %277 = vrot.lane.b32.xlu0 %v271, 64
  %v278 = vpop.permute.xlu0 %277
  %279 = vrot.lane.b32.xlu0 %v272, 64
  %v280 = vpop.permute.xlu0 %279
  %281 = vrot.lane.b32.xlu0 %v273, 64
  %v282 = vpop.permute.xlu0 %281
  %v283 = vsel %vm59, %v278, %v280
  %v284 = vsel %vm59, %v280, %v282
  %v287 = vadd.f32 %v253, %v283
  %v288 = vadd.f32 %v254, %v284
  %289 = vset.pattern.permute.xlu0 2
  %290 = vperm.xlu0 %289, %v239
  %v291 = vpop.permute.xlu0 %290
  %v293 = vlaneseq
  %v294 = vshrl.u32 %v293, 7
  %v295 = vsub.s32 0, %v294
  %v296 = vrot.slane %v237, %v295
  %v297 = vlaneseq
  %v298 = vshrl.u32 %v297, 7
  %v299 = vsub.s32 0, %v298
  %v300 = vrot.slane %v238, %v299
  %v301 = vmul.f32 %v291, %v296
  %v302 = vmul.f32 %v291, %v300
  %v303 = vadd.f32 %v287, %v301
  %v304 = vadd.f32 %v288, %v302
  %305 = vset.pattern.permute.xlu0 3
  %306 = vperm.xlu0 %305, %v239
  %v307 = vpop.permute.xlu0 %306
  %v309 = vadd.f32 %v303, %v307
  %v310 = vadd.f32 %v304, %v307
  %311 = vset.pattern.permute.xlu0 4
  %312 = vperm.xlu0 %311, %v239
  %v313 = vpop.permute.xlu0 %312
  %v315 = vmul.f32 %v313, %v262
  %v316 = vmul.f32 %v313, %v266
  %v317 = vmul.f32 %v313, %v270
  %318 = vset.pattern.permute.xlu0 5
  %319 = vperm.xlu0 %318, %v239
  %v320 = vpop.permute.xlu0 %319
  %v322 = vadd.f32 %v315, %v320
  %v323 = vadd.f32 %v316, %v320
  %v324 = vadd.f32 %v317, %v320
  %vm325 = vcmask 1045504
  %v326 = vsel %vm325, %v309, 0.0
  %v327 = vsel %vm325, %v310, 0.0
  %v328 = vadd.f32 %v326, %v327
  %329 = vadd.xlane.f32.xlu0 %v328
  %v330 = vpop.xlane.xlu0 %329
  %v331 = vmul.f32 %v330, 0.00390625
  %v332 = vmul.f32 %v309, %v309
  %v333 = vmul.f32 %v310, %v310
  %v334 = vsel %vm325, %v332, 0.0
  %v335 = vsel %vm325, %v333, 0.0
  %v336 = vadd.f32 %v334, %v335
  %337 = vadd.xlane.f32.xlu0 %v336
  %v338 = vpop.xlane.xlu0 %337
  %v339 = vmul.f32 %v338, 0.00390625
  %v340 = vmul.f32 %v331, %v331
  %v341 = vsub.f32 %v339, %v340
  %v342 = vsub.f32 %v309, %v331
  %v343 = vsub.f32 %v310, %v331
  %344 = vset.pattern.permute.xlu0 6
  %345 = vperm.xlu0 %344, %v239
  %v346 = vpop.permute.xlu0 %345
  %v348 = vmul.f32 %v346, %v342
  %v349 = vmul.f32 %v346, %v343
  %v350 = vadd.f32 %v341, 1e-05
  %v351 = vrsqrt.pop %v350
  %v352 = vmul.f32 %v348, %v351
  %v353 = vmul.f32 %v349, %v351
  %354 = vset.pattern.permute.xlu0 7
  %355 = vperm.xlu0 %354, %v239
  %v356 = vpop.permute.xlu0 %355
  %v358 = vadd.f32 %v352, %v356
  %v359 = vadd.f32 %v353, %v356
  %363 = vrot.lane.b32.xlu0 %v322, 64
  %v364 = vpop.permute.xlu0 %363
  %365 = vrot.lane.b32.xlu0 %v323, 64
  %v366 = vpop.permute.xlu0 %365
  %367 = vrot.lane.b32.xlu0 %v324, 64
  %v368 = vpop.permute.xlu0 %367
  %v369 = vsel %vm59, %v364, %v366
  %v370 = vsel %vm59, %v366, %v368
  %v373 = vsel %vm325, %v369, 0.0
  %v374 = vsel %vm325, %v370, 0.0
  %v375 = vadd.f32 %v373, %v374
  %376 = vadd.xlane.f32.xlu0 %v375
  %v377 = vpop.xlane.xlu0 %376
  %v378 = vmul.f32 %v377, 0.00390625
  %v379 = vmul.f32 %v322, %v322
  %v380 = vmul.f32 %v323, %v323
  %v381 = vmul.f32 %v324, %v324
  %385 = vrot.lane.b32.xlu0 %v379, 64
  %v386 = vpop.permute.xlu0 %385
  %387 = vrot.lane.b32.xlu0 %v380, 64
  %v388 = vpop.permute.xlu0 %387
  %389 = vrot.lane.b32.xlu0 %v381, 64
  %v390 = vpop.permute.xlu0 %389
  %v391 = vsel %vm59, %v386, %v388
  %v392 = vsel %vm59, %v388, %v390
  %v395 = vsel %vm325, %v391, 0.0
  %v396 = vsel %vm325, %v392, 0.0
  %v397 = vadd.f32 %v395, %v396
  %398 = vadd.xlane.f32.xlu0 %v397
  %v399 = vpop.xlane.xlu0 %398
  %v400 = vmul.f32 %v399, 0.00390625
  %v401 = vmul.f32 %v378, %v378
  %v402 = vsub.f32 %v400, %v401
  %v403 = vsub.f32 %v322, %v378
  %v404 = vsub.f32 %v323, %v378
  %v405 = vsub.f32 %v324, %v378
  %406 = vset.pattern.permute.xlu0 8
  %407 = vperm.xlu0 %406, %v239
  %v408 = vpop.permute.xlu0 %407
  %v410 = vmul.f32 %v408, %v403
  %v411 = vmul.f32 %v408, %v404
  %v412 = vmul.f32 %v408, %v405
  %v413 = vadd.f32 %v402, 1e-05
  %v414 = vrsqrt.pop %v413
  %v415 = vmul.f32 %v410, %v414
  %v416 = vmul.f32 %v411, %v414
  %v417 = vmul.f32 %v412, %v414
  %418 = vset.pattern.permute.xlu0 9
  %419 = vperm.xlu0 %418, %v239
  %v420 = vpop.permute.xlu0 %419
  %v422 = vadd.f32 %v415, %v420
  %v423 = vadd.f32 %v416, %v420
  %v424 = vadd.f32 %v417, %v420
  %428 = vrot.lane.b32.xlu0 %v422, 64
  %v429 = vpop.permute.xlu0 %428
  %430 = vrot.lane.b32.xlu0 %v423, 64
  %v431 = vpop.permute.xlu0 %430
  %432 = vrot.lane.b32.xlu0 %v424, 64
  %v433 = vpop.permute.xlu0 %432
  %v434 = vsel %vm59, %v429, %v431
  %v435 = vsel %vm59, %v431, %v433
  %v438 = vadd.f32 %v358, %v434
  %v439 = vadd.f32 %v359, %v435
  %440 = vst [vmem:[%s4] sm:$0x3f] %v438
  %441 = vst [vmem:[%s4 + $0x8] sm:$0x3f] %v439
  // Predicated region
  $region18: #{decoder_atcn_forward.1} parent=0 // pred_check
    _
  $region19: #{decoder_atcn_forward.1} parent=0 // pred_check_branch
    %443 = sbr.rel (0) target = $region21
  $region20: #{decoder_atcn_forward.1} parent=0 // pred_region
    _
  $region21: #{decoder_atcn_forward.1} parent=0 // pred_fallthru
    _
  // Predicated region
  $region22: #{decoder_atcn_forward.1} parent=0 // pred_check
    _
  $region23: #{decoder_atcn_forward.1} parent=0 // pred_check_branch
    %445 = sbr.rel (0) target = $region25
  $region24: #{decoder_atcn_forward.1} parent=0 // pred_region
    _
  $region25: #{decoder_atcn_forward.1} parent=0 // pred_fallthru
    _

</llo_original>
